<compile_context>
chip_gen: v6e
topology: v6e:2x2x1
jax: 0.10.0
libtpu: 0.0.40
codegen_flags: <defaults>
</compile_context>

<pallas_src>
import functools

import jax
import jax.numpy as jnp
from jax.experimental import pallas as pl
from jax.experimental.pallas import tpu as pltpu


# --------------------------------------------------------------------------- #
# Kernels
# --------------------------------------------------------------------------- #
def _second_matmul_operand(t, in_dtype):
    # Keep both matmuls native-dtype on the MXU: for low-precision inputs round
    # the f32 intermediate down instead of upcasting x1 to f32 (f32 MXU matmul
    # is emulated and ~3-4x slower, and the upcast doubles live VMEM for x1).
    # Deliberate precision/perf tradeoff; matches PyTorch low-precision bmm.
    if in_dtype == jnp.float32:
        return t
    return t.astype(in_dtype)


def _flat_kernel(x1_ref, x2_ref, o_ref, *, d):
    # Lane-dense blocks: refs are (1, tb, d*d).  Reshape to (tb, d, d) in VMEM
    # (cheap at small d, hides under DMA), compute, reshape back for the store
    # so the output store is a full-lane vst instead of masked vst.msk.
    tb = x1_ref.shape[1]
    x1 = x1_ref[0].reshape(tb, d, d)
    x2 = x2_ref[0].reshape(tb, d, d)
    # t = x1 @ x2^T : contract the LAST dims of both operands (RHS-transposed
    # matmul, MXU-native, no vxpose).
    t = jnp.einsum("bij,bkj->bik", x1, x2, preferred_element_type=jnp.float32)
    rhs = _second_matmul_operand(t, x1.dtype)
    out = jnp.einsum("bij,bjk->bik", rhs, x1, preferred_element_type=jnp.float32)
    o_ref[0] = out.astype(o_ref.dtype).reshape(tb, d * d)


def _bmm3d_kernel(x1_ref, x2_ref, o_ref):
    # Fallback small-D kernel: refs are (tb, D, D).
    x1 = x1_ref[...]
    x2 = x2_ref[...]
    t = jnp.einsum("bij,bkj->bik", x1, x2, preferred_element_type=jnp.float32)
    rhs = _second_matmul_operand(t, x1.dtype)
    out = jnp.einsum("bij,bjk->bik", rhs, x1, preferred_element_type=jnp.float32)
    o_ref[...] = out.astype(o_ref.dtype)


def _rowtile_kernel(x1m_ref, x2_ref, x1f_ref, o_ref):
    # Large-D path: x1m (1, TM, D) row block of x1, x2/x1f (1, D, D) resident
    # per batch element, out (1, TM, D).
    x1m = x1m_ref[0]
    x2 = x2_ref[0]
    x1f = x1f_ref[0]
    # t = x1m @ x2^T (contract minor dims of both -> MXU-native).
    t = jax.lax.dot_general(x1m, x2, (((1,), (1,)), ((), ())),
                            preferred_element_type=jnp.float32)
    rhs = _second_matmul_operand(t, x1f.dtype)
    out = jax.lax.dot_general(rhs, x1f, (((1,), (0,)), ((), ())),
                              preferred_element_type=jnp.float32)
    o_ref[0] = out.astype(o_ref.dtype)


# --------------------------------------------------------------------------- #
# Wrapper / tiling heuristics
# --------------------------------------------------------------------------- #
def _vmem_targets():
    """(block-selection budget, scoped-vmem cap) tuned per TPU generation."""
    cap = 0
    try:
        cap = int(getattr(pltpu.get_tpu_info(), "vmem_capacity_bytes", 0) or 0)
    except Exception:
        cap = 0
    if cap <= 0:
        cap = 64 * 1024 * 1024  # assume smallest (v7x per-TC) when unknown
    if cap <= 64 * 1024 * 1024:                     # v7x-class (64 MiB / TC)
        return 28 * 1024 * 1024, 40 * 1024 * 1024
    return 56 * 1024 * 1024, 96 * 1024 * 1024       # v5e / v6e (128 MiB)


def _maybe_vmem_limit(est_bytes, vmem_cap):
    if est_bytes <= 12 * 1024 * 1024:   # fits every generation's default scope
        return None
    return min(max(int(est_bytes * 3 // 2), 2 * 1024 * 1024), vmem_cap)


def _pick_tb(B, per_elem_bytes, budget):
    tb_cap = max(1, budget // max(1, per_elem_bytes))
    # Keep grid length >= min(B, 4): shards across v7x's 2 TensorCores and lets
    # BlockSpec double-buffering overlap DMA with compute. No divisor constraint.
    tb = max(1, min(tb_cap, pl.cdiv(B, min(B, 4))))
    return tb


def _forward_small_d_flat(x1, x2, B, D, itemsize, budget, vmem_cap, cost):
    dd = D * D
    # Per batch element: x1/x2/out double-buffered blocks + reshaped copies +
    # f32 intermediate + f32 accumulator.
    per_elem = dd * (8 * itemsize + 8)
    tb = _pick_tb(B, per_elem, budget)
    grid_b = pl.cdiv(B, tb)
    padded_b = grid_b * tb

    x1f = x1.reshape(B, dd)
    x2f = x2.reshape(B, dd)
    if padded_b != B:
        pad = ((0, padded_b - B), (0, 0))
        x1f = jnp.pad(x1f, pad)
        x2f = jnp.pad(x2f, pad)
    x1f = x1f.reshape(grid_b, tb, dd)
    x2f = x2f.reshape(grid_b, tb, dd)

    out = pl.pallas_call(
        functools.partial(_flat_kernel, d=D),
        out_shape=jax.ShapeDtypeStruct((grid_b, tb, dd), x1.dtype),
        grid=(grid_b,),
        in_specs=[
            pl.BlockSpec((1, tb, dd), lambda g: (g, 0, 0)),
            pl.BlockSpec((1, tb, dd), lambda g: (g, 0, 0)),
        ],
        out_specs=pl.BlockSpec((1, tb, dd), lambda g: (g, 0, 0)),
        compiler_params=pltpu.CompilerParams(
            dimension_semantics=("parallel",),
            vmem_limit_bytes=_maybe_vmem_limit(per_elem * tb, vmem_cap),
        ),
        cost_estimate=cost,
    )(x1f, x2f)
    return out.reshape(padded_b, D, D)[:B]


def _forward_small_d_3d(x1, x2, B, D, itemsize, budget, vmem_cap, cost):
    # Proven (tb, D, D) block layout; non-divisible B handled by cdiv + masked
    # partial blocks (garbage batches never stored).
    per_elem = D * D * (6 * itemsize + 8)
    tb = _pick_tb(B, per_elem, budget)
    grid_b = pl.cdiv(B, tb)
    return pl.pallas_call(
        _bmm3d_kernel,
        out_shape=jax.ShapeDtypeStruct((B, D, D), x1.dtype),
        grid=(grid_b,),
        in_specs=[
            pl.BlockSpec((tb, D, D), lambda b: (b, 0, 0)),
            pl.BlockSpec((tb, D, D), lambda b: (b, 0, 0)),
        ],
        out_specs=pl.BlockSpec((tb, D, D), lambda b: (b, 0, 0)),
        compiler_params=pltpu.CompilerParams(
            dimension_semantics=("parallel",),
            vmem_limit_bytes=_maybe_vmem_limit(per_elem * tb, vmem_cap),
        ),
        cost_estimate=cost,
    )(x1, x2)


def _forward_large_d(x1, x2, B, D, itemsize, budget, vmem_cap, cost):
    # Row-tile x1/out along M: per-step VMEM scales with TM*D; x2 and the full
    # x1 (RHS of the second matmul) stay resident per batch element (constant
    # index_map over the M axis -> their DMA is skipped on repeats).
    base = 4 * D * D * itemsize                       # x2 + x1_full, 2-buffered

    def footprint(tm):
        return base + tm * D * (4 * itemsize + 12)    # row blocks + f32 temps

    tm = 128
    for cand in (4096, 2048, 1024, 512, 256, 128):
        if cand <= D and footprint(cand) <= budget:
            tm = cand
            break
    assert footprint(tm) <= vmem_cap, (
        f"D={D}: resident x2/x1 tiles exceed VMEM ({footprint(tm)} > {vmem_cap})")
    # TODO(synk): add a K (contraction) tiling axis for D so large that even
    # TM=128 with a resident DxD tile does not fit VMEM.

    grid_m = pl.cdiv(D, tm)
    return pl.pallas_call(
        _rowtile_kernel,
        out_shape=jax.ShapeDtypeStruct((B, D, D), x1.dtype),
        grid=(B, grid_m),
        in_specs=[
            pl.BlockSpec((1, tm, D), lambda b, m: (b, m, 0)),   # x1 row block
            pl.BlockSpec((1, D, D), lambda b, m: (b, 0, 0)),    # x2 (resident)
            pl.BlockSpec((1, D, D), lambda b, m: (b, 0, 0)),    # x1 full (RHS)
        ],
        out_specs=pl.BlockSpec((1, tm, D), lambda b, m: (b, m, 0)),
        compiler_params=pltpu.CompilerParams(
            dimension_semantics=("parallel", "arbitrary"),
            vmem_limit_bytes=_maybe_vmem_limit(footprint(tm), vmem_cap),
        ),
        cost_estimate=cost,
    )(x1, x2, x1)


def model_forward(x1, x2):
    """Pallas implementation of Model.forward. x1, x2: (B, D, D)."""
    B, D, D2 = x1.shape
    assert D == D2 and x1.shape == x2.shape
    itemsize = jnp.dtype(x1.dtype).itemsize
    budget, vmem_cap = _vmem_targets()
    cost = pl.CostEstimate(flops=4 * B * D ** 3,
                           transcendentals=0,
                           bytes_accessed=3 * B * D * D * itemsize)
    if D < 128:
        try:
            return _forward_small_d_flat(x1, x2, B, D, itemsize, budget,
                                         vmem_cap, cost)
        except Exception:
            # In-kernel minor-dim reshape unsupported on this toolchain ->
            # fall back to the (tb, D, D) block layout (correct, just not
            # lane-dense).
            return _forward_small_d_3d(x1, x2, B, D, itemsize, budget,
                                       vmem_cap, cost)
    return _forward_large_d(x1, x2, B, D, itemsize, budget, vmem_cap, cost)


# --------------------------------------------------------------------------- #
# Pure-JAX reference mirroring the PyTorch module exactly
# --------------------------------------------------------------------------- #
def model_forward_ref(x1, x2):
    v1 = jnp.transpose(x1, (0, 2, 1))
    v2 = jnp.matmul(v1, x2)
    v3 = jnp.matmul(v1, jnp.transpose(x2, (0, 2, 1)))  # dead value in module
    del v3
    v4 = jnp.matmul(v2, v1)
    return jnp.transpose(v4, (0, 2, 1))


if __name__ == "__main__":
    key = jax.random.PRNGKey(0)

    def _check(B, D, atol=1e-3, rtol=1e-3):
        k1, k2 = jax.random.split(jax.random.fold_in(key, B * 1009 + D))
        x1 = jax.random.normal(k1, (B, D, D), dtype=jnp.float32)
        x2 = jax.random.normal(k2, (B, D, D), dtype=jnp.float32)
        out = jax.block_until_ready(model_forward(x1, x2))
        ref = model_forward_ref(x1, x2)
        assert out.shape == (B, D, D)
        assert jnp.allclose(out, ref, atol=atol, rtol=rtol), (B, D)

    _check(4, 16)     # lane-dense small-D path, grid length > 1
    _check(5, 16)     # non-divisible batch -> padded-batch path
    _check(2, 128)    # row-tiled large-D path
    print("KERNEL_OK")
</pallas_src>

<mosaic_0001>
module attributes {stable_mosaic.version = 11 : i64} {
  func.func @_flat_kernel(%arg0: i32, %arg1: memref<1x1x256xf32, #tpu.memory_space<vmem>>, %arg2: memref<1x1x256xf32, #tpu.memory_space<vmem>>, %arg3: memref<1x1x256xf32, #tpu.memory_space<vmem>>) attributes {dimension_semantics = [#tpu.dimension_semantics<parallel>], iteration_bounds = array<i64: 4>, scalar_prefetch = 0 : i64, scratch_operands = 0 : i64, tpu.core_type = #tpu.core_type<tc>, window_params = [{transform_indices = @transform_0, window_bounds = array<i64: 1, 1, 256>}, {transform_indices = @transform_1, window_bounds = array<i64: 1, 1, 256>}, {transform_indices = @transform_2, window_bounds = array<i64: 1, 1, 256>}]} {
    %c0 = arith.constant 0 : index
    %c0_0 = arith.constant 0 : index
    %c0_1 = arith.constant 0 : index
    %0 = vector.load %arg1[%c0, %c0_0, %c0_1] : memref<1x1x256xf32, #tpu.memory_space<vmem>>, vector<1x1x256xf32>
    %1 = vector.shape_cast %0 : vector<1x1x256xf32> to vector<1x256xf32>
    %2 = vector.shape_cast %1 : vector<1x256xf32> to vector<1x16x16xf32>
    %c0_2 = arith.constant 0 : index
    %c0_3 = arith.constant 0 : index
    %c0_4 = arith.constant 0 : index
    %3 = vector.load %arg2[%c0_2, %c0_3, %c0_4] : memref<1x1x256xf32, #tpu.memory_space<vmem>>, vector<1x1x256xf32>
    %4 = vector.shape_cast %3 : vector<1x1x256xf32> to vector<1x256xf32>
    %5 = vector.shape_cast %4 : vector<1x256xf32> to vector<1x16x16xf32>
    "tpu.trace_start"() <{level = 10 : i32, message = "bij,bkj->bik"}> : () -> ()
    %cst = arith.constant dense<0.000000e+00> : vector<1x16x16xf32>
    %6 = tpu.matmul %2, %5, %cst {dimension_numbers = #tpu.dot_dimension_numbers<[2], [2], [1], [1], [0, 0, 0, 1, 1, 1], [0], [0]>} : vector<1x16x16xf32>, vector<1x16x16xf32>, vector<1x16x16xf32> -> vector<1x16x16xf32>
    "tpu.trace_stop"() : () -> ()
    "tpu.trace_start"() <{level = 10 : i32, message = "bij,bjk->bik"}> : () -> ()
    %cst_5 = arith.constant dense<0.000000e+00> : vector<1x16x16xf32>
    %7 = tpu.matmul %6, %2, %cst_5 {dimension_numbers = #tpu.dot_dimension_numbers<[2], [1], [1], [2], [0, 0, 0, 1, 1, 2], [0], [0]>} : vector<1x16x16xf32>, vector<1x16x16xf32>, vector<1x16x16xf32> -> vector<1x16x16xf32>
    "tpu.trace_stop"() : () -> ()
    %8 = vector.shape_cast %7 : vector<1x16x16xf32> to vector<1x256xf32>
    %c0_6 = arith.constant 0 : index
    %c0_7 = arith.constant 0 : index
    %c0_8 = arith.constant 0 : index
    %9 = vector.load %arg3[%c0_6, %c0_7, %c0_8] : memref<1x1x256xf32, #tpu.memory_space<vmem>>, vector<1x1x256xf32>
    %10 = vector.shape_cast %9 : vector<1x1x256xf32> to vector<1x256xf32>
    %11 = vector.shape_cast %8 : vector<1x256xf32> to vector<1x1x256xf32>
    tpu.vector_store %arg3[%c0_6, %c0_7, %c0_8], %11 {strides = array<i32>} : memref<1x1x256xf32, #tpu.memory_space<vmem>>, vector<1x1x256xf32>,
    return
  }
  func.func @transform_0(%arg0: i32) -> (i32, i32, i32) {
    %c0_i32 = arith.constant 0 : i32
    %c0_i32_0 = arith.constant 0 : i32
    %c0_i32_1 = arith.constant 0 : i32
    return %arg0, %c0_i32, %c0_i32_0 : i32, i32, i32
  }
  func.func @transform_1(%arg0: i32) -> (i32, i32, i32) {
    %c0_i32 = arith.constant 0 : i32
    %c0_i32_0 = arith.constant 0 : i32
    %c0_i32_1 = arith.constant 0 : i32
    return %arg0, %c0_i32, %c0_i32_0 : i32, i32, i32
  }
  func.func @transform_2(%arg0: i32) -> (i32, i32, i32) {
    %c0_i32 = arith.constant 0 : i32
    %c0_i32_0 = arith.constant 0 : i32
    %c0_i32_1 = arith.constant 0 : i32
    return %arg0, %c0_i32, %c0_i32_0 : i32, i32, i32
  }
}

module attributes {stable_mosaic.version = 11 : i64} {
  func.func @_bmm3d_kernel(%arg0: i32, %arg1: memref<1x16x16xf32, #tpu.memory_space<vmem>>, %arg2: memref<1x16x16xf32, #tpu.memory_space<vmem>>, %arg3: memref<1x16x16xf32, #tpu.memory_space<vmem>>) attributes {dimension_semantics = [#tpu.dimension_semantics<parallel>], iteration_bounds = array<i64: 4>, scalar_prefetch = 0 : i64, scratch_operands = 0 : i64, tpu.core_type = #tpu.core_type<tc>, window_params = [{transform_indices = @transform_0, window_bounds = array<i64: 1, 16, 16>}, {transform_indices = @transform_1, window_bounds = array<i64: 1, 16, 16>}, {transform_indices = @transform_2, window_bounds = array<i64: 1, 16, 16>}]} {
    %c0 = arith.constant 0 : index
    %c0_0 = arith.constant 0 : index
    %c0_1 = arith.constant 0 : index
    %0 = vector.load %arg1[%c0, %c0_0, %c0_1] : memref<1x16x16xf32, #tpu.memory_space<vmem>>, vector<1x16x16xf32>
    %c0_2 = arith.constant 0 : index
    %c0_3 = arith.constant 0 : index
    %c0_4 = arith.constant 0 : index
    %1 = vector.load %arg2[%c0_2, %c0_3, %c0_4] : memref<1x16x16xf32, #tpu.memory_space<vmem>>, vector<1x16x16xf32>
    "tpu.trace_start"() <{level = 10 : i32, message = "bij,bkj->bik"}> : () -> ()
    %cst = arith.constant dense<0.000000e+00> : vector<1x16x16xf32>
    %2 = tpu.matmul %0, %1, %cst {dimension_numbers = #tpu.dot_dimension_numbers<[2], [2], [1], [1], [0, 0, 0, 1, 1, 1], [0], [0]>} : vector<1x16x16xf32>, vector<1x16x16xf32>, vector<1x16x16xf32> -> vector<1x16x16xf32>
    "tpu.trace_stop"() : () -> ()
    "tpu.trace_start"() <{level = 10 : i32, message = "bij,bjk->bik"}> : () -> ()
    %cst_5 = arith.constant dense<0.000000e+00> : vector<1x16x16xf32>
    %3 = tpu.matmul %2, %0, %cst_5 {dimension_numbers = #tpu.dot_dimension_numbers<[2], [1], [1], [2], [0, 0, 0, 1, 1, 2], [0], [0]>} : vector<1x16x16xf32>, vector<1x16x16xf32>, vector<1x16x16xf32> -> vector<1x16x16xf32>
    "tpu.trace_stop"() : () -> ()
    %c0_6 = arith.constant 0 : index
    %c0_7 = arith.constant 0 : index
    %c0_8 = arith.constant 0 : index
    %4 = vector.load %arg3[%c0_6, %c0_7, %c0_8] : memref<1x16x16xf32, #tpu.memory_space<vmem>>, vector<1x16x16xf32>
    tpu.vector_store %arg3[%c0_6, %c0_7, %c0_8], %3 {strides = array<i32>} : memref<1x16x16xf32, #tpu.memory_space<vmem>>, vector<1x16x16xf32>,
    return
  }
  func.func @transform_0(%arg0: i32) -> (i32, i32, i32) {
    %c0_i32 = arith.constant 0 : i32
    %c0_i32_0 = arith.constant 0 : i32
    %c0_i32_1 = arith.constant 0 : i32
    return %arg0, %c0_i32, %c0_i32_0 : i32, i32, i32
  }
  func.func @transform_1(%arg0: i32) -> (i32, i32, i32) {
    %c0_i32 = arith.constant 0 : i32
    %c0_i32_0 = arith.constant 0 : i32
    %c0_i32_1 = arith.constant 0 : i32
    return %arg0, %c0_i32, %c0_i32_0 : i32, i32, i32
  }
  func.func @transform_2(%arg0: i32) -> (i32, i32, i32) {
    %c0_i32 = arith.constant 0 : i32
    %c0_i32_0 = arith.constant 0 : i32
    %c0_i32_1 = arith.constant 0 : i32
    return %arg0, %c0_i32, %c0_i32_0 : i32, i32, i32
  }
}

</mosaic_0001>

<llo_original>
// kernel: tpu_custom_call.1
$region0: #{tpu_custom_call.1}
  #allocation0 [shape = 'u32[]', space=smem, size = 0x4, offset = 0x4, fixed_abs, tag = 'smem constant byte address 0x4 - core index']
  #allocation1 [shape = 'u32[144,128]{1,0:T(1,128)}', space=vmem, size = 0x12000, scoped, tag = 'internal scratch']
  %s0 = inlined_call_operand.hbm [shape: f32[4,1,256], index: 0, kind: input, shape index: {}]
  %s1 = inlined_call_operand.hbm [shape: f32[4,1,256], index: 1, kind: input, shape index: {}]
  %s2 = inlined_call_operand.hbm [shape: f32[4,1,256], index: 2, kind: output, shape index: {}]
  %s3 = sld [smem:[#allocation0]]
  $region49: #{tpu_custom_call.1} parent=0
    _
  %s5 = ssub.s32 1, %s3
  %s6 = scalar_select 0, %s5, %s3
  $region1: #{tpu_custom_call.1} parent=0
    #allocation2 [shape = 'u8[2048]{0}', space=vmem, size = 0x800, scoped, tag = 'input window, operand 0']
    #allocation3 [shape = 's32[2]{0}', space=sflag, size = 0x8, scoped, tag = 'scoped memory for tpu_custom_call.1']
    #allocation4 [shape = 's32[2]{0}', space=sflag, size = 0x8, scoped, tag = 'scoped memory for tpu_custom_call.1']
    #allocation5 [shape = 'u8[2048]{0}', space=vmem, size = 0x800, scoped, tag = 'input window, operand 1']
    #allocation6 [shape = 's32[2]{0}', space=sflag, size = 0x8, scoped, tag = 'scoped memory for tpu_custom_call.1']
    #allocation7 [shape = 'u8[2048]{0}', space=vmem, size = 0x800, scoped, tag = 'output window, operand 0']
    %7 = vsyncpa [#allocation3], 0
    %s8 = scalar_lea.sflag [#allocation3], 1
    %9 = vsyncpa %s8, 0
    %10 = vsyncpa [#allocation6], 0
    %s11 = scalar_lea.sflag [#allocation6], 1
    %12 = vsyncpa %s11, 0
    %13 = vsyncpa [#allocation4], 0
    %s14 = scalar_lea.sflag [#allocation4], 1
    %15 = vsyncpa %s14, 0
    loop: start=0, step=1, limit=6
    $region2: #{tpu_custom_call.1} parent=1 // loop_pre_header
      _
    $region3: #{tpu_custom_call.1} parent=1 // loop_header
      %s17 = sphi 0, %s21
      %p18 = scmp.ge.s32.totalorder %s17, 6
      %s27 = sphi 0, %s29
      %s30 = sphi 0, %s27
      %s31 = sphi 0, %s30
      %s47 = sphi 0, %s31
      %s53 = sphi 0, %s55
      %s56 = sphi 0, %s53
      %s57 = sphi 0, %s56
      %s73 = sphi 0, %s57
      %s79 = sphi 0, %s81
      %s82 = sphi 0, %s79
      %s83 = sphi 0, %s82
      %s99 = sphi 0, %s83
    $region4: #{tpu_custom_call.1} parent=1 // loop_header_branch
      %20 = sbr.rel (%p18) target = $region8
    $region5: #{tpu_custom_call.1} parent=1 // loop_body
      %s22 = ssub.s32 %s17, 1
      %s23 = ssub.s32 %s17, 2
      %s24 = sadd.s32 %s17, 1
      %s25 = ssub.s32 %s17, %s24
      %p26 = scmp.eq.s32.totalorder %s25, 0
      %s28 = sadd.s32 %s27, 1
      %s29 = scalar_select %p26, %s27, %s28
      %p32 = pneg %p26
      %p33 = scmp.eq.s32.totalorder %s17, 3
      %p34 = por %p32, %p33
      %p35 = scmp.ne.s32.totalorder %s27, %s30
      %p36 = scmp.eq.s32.totalorder %s17, 0
      %p37 = por %p35, %p36
      %p38 = scmp.ne.s32.totalorder %s27, %s30
      %p39 = scmp.eq.s32.totalorder %s22, 3
      %p40 = por %p38, %p39
      %p41 = scmp.ne.s32.totalorder %s30, %s31
      %p42 = scmp.eq.s32.totalorder %s22, 0
      %p43 = por %p41, %p42
      %p44 = scmp.ne.s32.totalorder %s30, %s31
      %p45 = scmp.eq.s32.totalorder %s23, 3
      %p46 = por %p44, %p45
      %p48 = scmp.ne.s32.totalorder %s31, %s47
      %p49 = scmp.eq.s32.totalorder %s23, 0
      %p50 = por %p48, %p49
      %s51 = ssub.s32 %s17, %s24
      %p52 = scmp.eq.s32.totalorder %s51, 0
      %s54 = sadd.s32 %s53, 1
      %s55 = scalar_select %p52, %s53, %s54
      %p58 = pneg %p52
      %p59 = scmp.eq.s32.totalorder %s17, 3
      %p60 = por %p58, %p59
      %p61 = scmp.ne.s32.totalorder %s53, %s56
      %p62 = scmp.eq.s32.totalorder %s17, 0
      %p63 = por %p61, %p62
      %p64 = scmp.ne.s32.totalorder %s53, %s56
      %p65 = scmp.eq.s32.totalorder %s22, 3
      %p66 = por %p64, %p65
      %p67 = scmp.ne.s32.totalorder %s56, %s57
      %p68 = scmp.eq.s32.totalorder %s22, 0
      %p69 = por %p67, %p68
      %p70 = scmp.ne.s32.totalorder %s56, %s57
      %p71 = scmp.eq.s32.totalorder %s23, 3
      %p72 = por %p70, %p71
      %p74 = scmp.ne.s32.totalorder %s57, %s73
      %p75 = scmp.eq.s32.totalorder %s23, 0
      %p76 = por %p74, %p75
      %s77 = ssub.s32 %s17, %s24
      %p78 = scmp.eq.s32.totalorder %s77, 0
      %s80 = sadd.s32 %s79, 1
      %s81 = scalar_select %p78, %s79, %s80
      %p84 = pneg %p78
      %p85 = scmp.eq.s32.totalorder %s17, 3
      %p86 = por %p84, %p85
      %p87 = scmp.ne.s32.totalorder %s79, %s82
      %p88 = scmp.eq.s32.totalorder %s17, 0
      %p89 = por %p87, %p88
      %p90 = scmp.ne.s32.totalorder %s79, %s82
      %p91 = scmp.eq.s32.totalorder %s22, 3
      %p92 = por %p90, %p91
      %p93 = scmp.ne.s32.totalorder %s82, %s83
      %p94 = scmp.eq.s32.totalorder %s22, 0
      %p95 = por %p93, %p94
      %p96 = scmp.ne.s32.totalorder %s82, %s83
      %p97 = scmp.eq.s32.totalorder %s23, 3
      %p98 = por %p96, %p97
      %p100 = scmp.ne.s32.totalorder %s83, %s99
      %p101 = scmp.eq.s32.totalorder %s23, 0
      %p102 = por %p100, %p101
      %p103 = scmp.le.s32.totalorder 1, %s17
      %p104 = scmp.lt.s32.totalorder %s17, 5
      %p105 = pnand %p103, %p104
      %p106 = pneg %p105
      // Predicated region
      $region9: #{tpu_custom_call.1} parent=5 // pred_check
        _
      $region10: #{tpu_custom_call.1} parent=5 // pred_check_branch
        %108 = sbr.rel (%p105) target = $region12
      $region11: #{tpu_custom_call.1} parent=5 // pred_region
        %s109 = ssub.s32 %s17, 1
      $region12: #{tpu_custom_call.1} parent=5 // pred_fallthru
        _
      %p110 = scmp.lt.s32.totalorder %s17, 4
      // Predicated region
      $region13: #{tpu_custom_call.1} parent=5 // pred_check
        %p111 = pneg %p110
      $region14: #{tpu_custom_call.1} parent=5 // pred_check_branch
        %113 = sbr.rel (%p111) target = $region16
      $region15: #{tpu_custom_call.1} parent=5 // pred_region
        // Predicated region
        $region17: #{tpu_custom_call.1} parent=15 // pred_check
          %p114 = pneg %p37
        $region18: #{tpu_custom_call.1} parent=15 // pred_check_branch
          %116 = sbr.rel (%p114) target = $region20
        $region19: #{tpu_custom_call.1} parent=15 // pred_region
          %s117 = sand.u32 %s27, 1
          %s118 = scalar_lea.sflag [#allocation3], %s117
          %s119 = sand.u32 %s27, 1
          %s120 = smul.addr %s119, 2
          %s121 = scalar_lea.vmem [#allocation2], %s120
          %s123 = ssub.s32 32, 32
          %124 = vsyncadd %s118, %s123
          %s125 = smul.addr %s17, 2
          %s126 = smul.addr %s125, 16
          %s127 = scalar_lea.hbm %s0, %s126
          %s129 = sshll.u32 %s121, 4
          %s130 = int_to_ptr.vmem [resolvable:$true] %s129
          %132 = dma.hbm_to_vmem [thread:$0]  %s127, 32, %s130, %s118
        $region20: #{tpu_custom_call.1} parent=15 // pred_fallthru
          _
        // Predicated region
        $region21: #{tpu_custom_call.1} parent=15 // pred_check
          %p133 = pneg %p63
        $region22: #{tpu_custom_call.1} parent=15 // pred_check_branch
          %135 = sbr.rel (%p133) target = $region24
        $region23: #{tpu_custom_call.1} parent=15 // pred_region
          %s136 = sand.u32 %s53, 1
          %s137 = scalar_lea.sflag [#allocation6], %s136
          %s138 = sand.u32 %s53, 1
          %s139 = smul.addr %s138, 2
          %s140 = scalar_lea.vmem [#allocation5], %s139
          %s142 = ssub.s32 32, 32
          %143 = vsyncadd %s137, %s142
          %s144 = smul.addr %s17, 2
          %s145 = smul.addr %s144, 16
          %s146 = scalar_lea.hbm %s1, %s145
          %s148 = sshll.u32 %s140, 4
          %s149 = int_to_ptr.vmem [resolvable:$true] %s148
          %151 = dma.hbm_to_vmem [thread:$0]  %s146, 32, %s149, %s137
        $region24: #{tpu_custom_call.1} parent=15 // pred_fallthru
          _
      $region16: #{tpu_custom_call.1} parent=5 // pred_fallthru
        _
      %p152 = scmp.le.s32.totalorder 1, %s17
      %p153 = scmp.lt.s32.totalorder %s17, 5
      %p154 = pnand %p152, %p153
      %p155 = pneg %p154
      // Predicated region
      $region25: #{tpu_custom_call.1} parent=5 // pred_check
        _
      $region26: #{tpu_custom_call.1} parent=5 // pred_check_branch
        %157 = sbr.rel (%p154) target = $region28
      $region27: #{tpu_custom_call.1} parent=5 // pred_region
        %s158 = ssub.s32 %s17, 1
        %s159 = sand.u32 %s30, 1
        %s160 = scalar_lea.sflag [#allocation3], %s159
        %s161 = sand.u32 %s30, 1
        %s162 = smul.addr %s161, 2
        %s163 = scalar_lea.vmem [#allocation2], %s162
        // Predicated region
        $region29: #{tpu_custom_call.1} parent=27 // pred_check
          %p164 = pneg %p43
        $region30: #{tpu_custom_call.1} parent=27 // pred_check_branch
          %166 = sbr.rel (%p164) target = $region32
        $region31: #{tpu_custom_call.1} parent=27 // pred_region
          %167 = dma.done %s160, 32
        $region32: #{tpu_custom_call.1} parent=27 // pred_fallthru
          _
        %s168 = sand.u32 %s56, 1
        %s169 = scalar_lea.sflag [#allocation6], %s168
        %s170 = sand.u32 %s56, 1
        %s171 = smul.addr %s170, 2
        %s172 = scalar_lea.vmem [#allocation5], %s171
        // Predicated region
        $region33: #{tpu_custom_call.1} parent=27 // pred_check
          %p173 = pneg %p69
        $region34: #{tpu_custom_call.1} parent=27 // pred_check_branch
          %175 = sbr.rel (%p173) target = $region36
        $region35: #{tpu_custom_call.1} parent=27 // pred_region
          %176 = dma.done %s169, 32
        $region36: #{tpu_custom_call.1} parent=27 // pred_fallthru
          _
        %s177 = sand.u32 %s30, 1
        %s178 = scalar_lea.sflag [#allocation3], %s177
        %s179 = sand.u32 %s30, 1
        %s180 = smul.addr %s179, 2
        %s181 = scalar_lea.vmem [#allocation2], %s180
        %p182 = pneg %p43
        %p183 = pneg %p40
        %s184 = sand.u32 %s56, 1
        %s185 = scalar_lea.sflag [#allocation6], %s184
        %s186 = sand.u32 %s56, 1
        %s187 = smul.addr %s186, 2
        %s188 = scalar_lea.vmem [#allocation5], %s187
        %p189 = pneg %p69
        %p190 = pneg %p66
        %p191 = pneg %p95
        %p192 = pneg %p92
        %s193 = sand.u32 %s82, 1
        %s194 = scalar_lea.sflag [#allocation4], %s193
        %s195 = sand.u32 %s82, 1
        %s196 = smul.addr %s195, 2
        %s197 = scalar_lea.vmem [#allocation7], %s196
        %v198 = vld [vmem:[%s163] sm:$0x3]
        %v200 = vrot.slane %v198, 1
        %201 = vrot.lane.b32.xlu0 %v198, 112
        %v202 = vpop.permute.xlu0 %201
        %v203 = vrot.slane %v202, 1
        %204 = vrot.lane.b32.xlu0 %v198, 96
        %v205 = vpop.permute.xlu0 %204
        %v206 = vrot.slane %v205, 1
        %207 = vrot.lane.b32.xlu0 %v198, 80
        %v208 = vpop.permute.xlu0 %207
        %v209 = vrot.slane %v208, 1
        %210 = vrot.lane.b32.xlu0 %v198, 64
        %v211 = vpop.permute.xlu0 %210
        %v212 = vrot.slane %v211, 1
        %213 = vrot.lane.b32.xlu0 %v198, 48
        %v214 = vpop.permute.xlu0 %213
        %v215 = vrot.slane %v214, 1
        %216 = vrot.lane.b32.xlu0 %v198, 32
        %v217 = vpop.permute.xlu0 %216
        %v218 = vrot.slane %v217, 1
        %219 = vrot.lane.b32.xlu0 %v198, 16
        %v220 = vpop.permute.xlu0 %219
        %v221 = vrot.slane %v220, 1
        %v222 = vld [vmem:[%s172] sm:$0x3]
        %v224 = vrot.slane %v222, 1
        %225 = vrot.lane.b32.xlu0 %v222, 112
        %v226 = vpop.permute.xlu0 %225
        %v227 = vrot.slane %v226, 1
        %228 = vrot.lane.b32.xlu0 %v222, 96
        %v229 = vpop.permute.xlu0 %228
        %v230 = vrot.slane %v229, 1
        %231 = vrot.lane.b32.xlu0 %v222, 80
        %v232 = vpop.permute.xlu0 %231
        %v233 = vrot.slane %v232, 1
        %234 = vrot.lane.b32.xlu0 %v222, 64
        %v235 = vpop.permute.xlu0 %234
        %v236 = vrot.slane %v235, 1
        %237 = vrot.lane.b32.xlu0 %v222, 48
        %v238 = vpop.permute.xlu0 %237
        %v239 = vrot.slane %v238, 1
        %240 = vrot.lane.b32.xlu0 %v222, 32
        %v241 = vpop.permute.xlu0 %240
        %v242 = vrot.slane %v241, 1
        %243 = vrot.lane.b32.xlu0 %v222, 16
        %v244 = vpop.permute.xlu0 %243
        %v245 = vrot.slane %v244, 1
        %v246 = vcombine.low %v198, %v202
        %v247 = vcombine.low %v205, %v208
        %v248 = vcombine.low %v211, %v214
        %v249 = vcombine.low %v217, %v220
        %v251 = vunpack.c.l.s4 1966171168
        %v252 = vunpack.c.0.s8 %v251
        %v253 = vlaneseq
        %v254 = vshrl.u32 %v253, 7
        %v255 = vsub.s32 %v252, %v254
        %v256 = vrot.slane %v246, %v255
        %v258 = vunpack.c.l.s4 1966171168
        %v259 = vunpack.c.0.s8 %v258
        %v260 = vlaneseq
        %v261 = vshrl.u32 %v260, 7
        %v262 = vsub.s32 %v259, %v261
        %v263 = vrot.slane %v247, %v262
        %v265 = vunpack.c.l.s4 1966171168
        %v266 = vunpack.c.0.s8 %v265
        %v267 = vlaneseq
        %v268 = vshrl.u32 %v267, 7
        %v269 = vsub.s32 %v266, %v268
        %v270 = vrot.slane %v248, %v269
        %v272 = vunpack.c.l.s4 1966171168
        %v273 = vunpack.c.0.s8 %v272
        %v274 = vlaneseq
        %v275 = vshrl.u32 %v274, 7
        %v276 = vsub.s32 %v273, %v275
        %v277 = vrot.slane %v249, %v276
        %v278 = vcombine.low %v256, %v263
        %v279 = vcombine.low %v270, %v277
        %v281 = vunpack.c.l.s4 1966171168
        %v282 = vunpack.c.0.s8 %v281
        %v283 = vlaneseq
        %v284 = vshrl.u32 %v283, 7
        %v285 = vsub.s32 %v282, %v284
        %v286 = vrot.slane %v278, %v285
        %v288 = vunpack.c.l.s4 1966171168
        %v289 = vunpack.c.0.s8 %v288
        %v290 = vlaneseq
        %v291 = vshrl.u32 %v290, 7
        %v292 = vsub.s32 %v289, %v291
        %v293 = vrot.slane %v279, %v292
        %v294 = vcombine.low %v286, %v293
        %v295 = vcombine.low %v200, %v203
        %v296 = vcombine.low %v206, %v209
        %v297 = vcombine.low %v212, %v215
        %v298 = vcombine.low %v218, %v221
        %v300 = vunpack.c.l.s4 1966171168
        %v301 = vunpack.c.0.s8 %v300
        %v302 = vlaneseq
        %v303 = vshrl.u32 %v302, 7
        %v304 = vsub.s32 %v301, %v303
        %v305 = vrot.slane %v295, %v304
        %v307 = vunpack.c.l.s4 1966171168
        %v308 = vunpack.c.0.s8 %v307
        %v309 = vlaneseq
        %v310 = vshrl.u32 %v309, 7
        %v311 = vsub.s32 %v308, %v310
        %v312 = vrot.slane %v296, %v311
        %v314 = vunpack.c.l.s4 1966171168
        %v315 = vunpack.c.0.s8 %v314
        %v316 = vlaneseq
        %v317 = vshrl.u32 %v316, 7
        %v318 = vsub.s32 %v315, %v317
        %v319 = vrot.slane %v297, %v318
        %v321 = vunpack.c.l.s4 1966171168
        %v322 = vunpack.c.0.s8 %v321
        %v323 = vlaneseq
        %v324 = vshrl.u32 %v323, 7
        %v325 = vsub.s32 %v322, %v324
        %v326 = vrot.slane %v298, %v325
        %v327 = vcombine.low %v305, %v312
        %v328 = vcombine.low %v319, %v326
        %v330 = vunpack.c.l.s4 1966171168
        %v331 = vunpack.c.0.s8 %v330
        %v332 = vlaneseq
        %v333 = vshrl.u32 %v332, 7
        %v334 = vsub.s32 %v331, %v333
        %v335 = vrot.slane %v327, %v334
        %v337 = vunpack.c.l.s4 1966171168
        %v338 = vunpack.c.0.s8 %v337
        %v339 = vlaneseq
        %v340 = vshrl.u32 %v339, 7
        %v341 = vsub.s32 %v338, %v340
        %v342 = vrot.slane %v328, %v341
        %v343 = vcombine.low %v335, %v342
        %v344 = vcombine.low %v222, %v226
        %v345 = vcombine.low %v229, %v232
        %v346 = vcombine.low %v235, %v238
        %v347 = vcombine.low %v241, %v244
        %v349 = vunpack.c.l.s4 1966171168
        %v350 = vunpack.c.0.s8 %v349
        %v351 = vlaneseq
        %v352 = vshrl.u32 %v351, 7
        %v353 = vsub.s32 %v350, %v352
        %v354 = vrot.slane %v344, %v353
        %v356 = vunpack.c.l.s4 1966171168
        %v357 = vunpack.c.0.s8 %v356
        %v358 = vlaneseq
        %v359 = vshrl.u32 %v358, 7
        %v360 = vsub.s32 %v357, %v359
        %v361 = vrot.slane %v345, %v360
        %v363 = vunpack.c.l.s4 1966171168
        %v364 = vunpack.c.0.s8 %v363
        %v365 = vlaneseq
        %v366 = vshrl.u32 %v365, 7
        %v367 = vsub.s32 %v364, %v366
        %v368 = vrot.slane %v346, %v367
        %v370 = vunpack.c.l.s4 1966171168
        %v371 = vunpack.c.0.s8 %v370
        %v372 = vlaneseq
        %v373 = vshrl.u32 %v372, 7
        %v374 = vsub.s32 %v371, %v373
        %v375 = vrot.slane %v347, %v374
        %v376 = vcombine.low %v354, %v361
        %v377 = vcombine.low %v368, %v375
        %v379 = vunpack.c.l.s4 1966171168
        %v380 = vunpack.c.0.s8 %v379
        %v381 = vlaneseq
        %v382 = vshrl.u32 %v381, 7
        %v383 = vsub.s32 %v380, %v382
        %v384 = vrot.slane %v376, %v383
        %v386 = vunpack.c.l.s4 1966171168
        %v387 = vunpack.c.0.s8 %v386
        %v388 = vlaneseq
        %v389 = vshrl.u32 %v388, 7
        %v390 = vsub.s32 %v387, %v389
        %v391 = vrot.slane %v377, %v390
        %v392 = vcombine.low %v384, %v391
        %v393 = vcombine.low %v224, %v227
        %v394 = vcombine.low %v230, %v233
        %v395 = vcombine.low %v236, %v239
        %v396 = vcombine.low %v242, %v245
        %v398 = vunpack.c.l.s4 1966171168
        %v399 = vunpack.c.0.s8 %v398
        %v400 = vlaneseq
        %v401 = vshrl.u32 %v400, 7
        %v402 = vsub.s32 %v399, %v401
        %v403 = vrot.slane %v393, %v402
        %v405 = vunpack.c.l.s4 1966171168
        %v406 = vunpack.c.0.s8 %v405
        %v407 = vlaneseq
        %v408 = vshrl.u32 %v407, 7
        %v409 = vsub.s32 %v406, %v408
        %v410 = vrot.slane %v394, %v409
        %v412 = vunpack.c.l.s4 1966171168
        %v413 = vunpack.c.0.s8 %v412
        %v414 = vlaneseq
        %v415 = vshrl.u32 %v414, 7
        %v416 = vsub.s32 %v413, %v415
        %v417 = vrot.slane %v395, %v416
        %v419 = vunpack.c.l.s4 1966171168
        %v420 = vunpack.c.0.s8 %v419
        %v421 = vlaneseq
        %v422 = vshrl.u32 %v421, 7
        %v423 = vsub.s32 %v420, %v422
        %v424 = vrot.slane %v396, %v423
        %v425 = vcombine.low %v403, %v410
        %v426 = vcombine.low %v417, %v424
        %v428 = vunpack.c.l.s4 1966171168
        %v429 = vunpack.c.0.s8 %v428
        %v430 = vlaneseq
        %v431 = vshrl.u32 %v430, 7
        %v432 = vsub.s32 %v429, %v431
        %v433 = vrot.slane %v425, %v432
        %v435 = vunpack.c.l.s4 1966171168
        %v436 = vunpack.c.0.s8 %v435
        %v437 = vlaneseq
        %v438 = vshrl.u32 %v437, 7
        %v439 = vsub.s32 %v436, %v438
        %v440 = vrot.slane %v426, %v439
        %v441 = vcombine.low %v433, %v440
        %vm442 = vcmask 130048
        %v443 = vsel %vm442, %v294, 0
        %v445 = vsel %vm442, %v343, 0
        %v447 = vsel %vm442, %v392, 0
        %v449 = vsel %vm442, %v441, 0
        %451 = vmatprep.subr.mxu0 0.0
        %452 = vmatpush1.xpose.msra.mxu0 0.0
        %453 = vmatprep.subr.mxu0 0.0
        %454 = vmatpush1.xpose.msra.mxu0 0.0
        %455 = vmatprep.subr.mxu0 0.0
        %456 = vmatpush1.xpose.msra.mxu0 0.0
        %457 = vmatprep.subr.mxu0 0.0
        %458 = vmatpush1.xpose.msra.mxu0 0.0
        %459 = vmatprep.subr.mxu0 0.0
        %460 = vmatpush1.xpose.msra.mxu0 0.0
        %461 = vmatprep.subr.mxu0 0.0
        %462 = vmatpush1.xpose.msra.mxu0 0.0
        %463 = vmatprep.subr.mxu0 0.0
        %464 = vmatpush1.xpose.msra.mxu0 0.0
        %465 = vmatprep.subr.mxu0 0.0
        %466 = vmatpush1.xpose.msra.mxu0 0.0
        %467 = vmatprep.subr.mxu0 0.0
        %468 = vmatpush1.xpose.msra.mxu0 0.0
        %469 = vmatprep.subr.mxu0 0.0
        %470 = vmatpush1.xpose.msra.mxu0 0.0
        %471 = vmatprep.subr.mxu0 0.0
        %472 = vmatpush1.xpose.msra.mxu0 0.0
        %473 = vmatprep.subr.mxu0 0.0
        %474 = vmatpush1.xpose.msra.mxu0 0.0
        %475 = vmatprep.subr.mxu0 0.0
        %476 = vmatpush1.xpose.msra.mxu0 0.0
        %477 = vmatprep.subr.mxu0 0.0
        %478 = vmatpush1.xpose.msra.mxu0 0.0
        %479 = vmatprep.subr.mxu0 0.0
        %480 = vmatpush1.xpose.msra.mxu0 %v449
        %481 = vmatprep.subr.mxu0 0.0
        %482 = vmatpush1.xpose.msra.mxu0 %v447
        %483 = vmatprep.subr.mxu0 0.0
        %484 = vmatpush2.xpose.msra.mxu0 0.0
        %485 = vmatprep.subr.mxu0 0.0
        %486 = vmatpush2.xpose.msra.mxu0 0.0
        %487 = vmatprep.subr.mxu0 0.0
        %488 = vmatpush2.xpose.msra.mxu0 0.0
        %489 = vmatprep.subr.mxu0 0.0
        %490 = vmatpush2.xpose.msra.mxu0 0.0
        %491 = vmatprep.subr.mxu0 0.0
        %492 = vmatpush2.xpose.msra.mxu0 0.0
        %493 = vmatprep.subr.mxu0 0.0
        %494 = vmatpush2.xpose.msra.mxu0 0.0
        %495 = vmatprep.subr.mxu0 0.0
        %496 = vmatpush2.xpose.msra.mxu0 0.0
        %497 = vmatprep.subr.mxu0 0.0
        %498 = vmatpush2.xpose.msra.mxu0 0.0
        %499 = vmatprep.subr.mxu0 0.0
        %500 = vmatpush2.xpose.msra.mxu0 0.0
        %501 = vmatprep.subr.mxu0 0.0
        %502 = vmatpush2.xpose.msra.mxu0 0.0
        %503 = vmatprep.subr.mxu0 0.0
        %504 = vmatpush2.xpose.msra.mxu0 0.0
        %505 = vmatprep.subr.mxu0 0.0
        %506 = vmatpush2.xpose.msra.mxu0 0.0
        %507 = vmatprep.subr.mxu0 0.0
        %508 = vmatpush2.xpose.msra.mxu0 0.0
        %509 = vmatprep.subr.mxu0 0.0
        %510 = vmatpush2.xpose.msra.mxu0 0.0
        %511 = vmatprep.subr.mxu0 0.0
        %512 = vmatpush2.xpose.msra.mxu0 0.0
        %513 = vmatprep.subr.mxu0 0.0
        %514 = vmatpush2.xpose.msra.mxu0 0.0
        %515 = vmatprep.mubr.f32.mxu0 0.0
        %516 = vmatmul.mubr.f32.gmra.mxu0 %v443
        %v517 = vpop.f32.mrf.mxu0
        %v518 = vadd.f32 0.0, %v517
        %v519 = vpop.f32.mrf.mxu0
        %520 = vmatprep.mubr.f32.mxu0 0.0
        %521 = vmatmul.mubr.f32.gmra.mxu0 %v445
        %v522 = vpop.f32.mrf.mxu0
        %v523 = vadd.f32 0.0, %v522
        %v524 = vpop.f32.mrf.mxu0
        %525 = vdwg.mxu0
        %v529 = vsel %vm442, %v518, 0
        %v532 = vsel %vm442, %v523, 0
        %534 = vmatprep.subr.mxu0 0.0
        %535 = vmatpush1.msra.mxu0 0.0
        %536 = vmatprep.subr.mxu0 0.0
        %537 = vmatpush1.msra.mxu0 0.0
        %538 = vmatprep.subr.mxu0 0.0
        %539 = vmatpush1.msra.mxu0 0.0
        %540 = vmatprep.subr.mxu0 0.0
        %541 = vmatpush1.msra.mxu0 0.0
        %542 = vmatprep.subr.mxu0 0.0
        %543 = vmatpush1.msra.mxu0 0.0
        %544 = vmatprep.subr.mxu0 0.0
        %545 = vmatpush1.msra.mxu0 0.0
        %546 = vmatprep.subr.mxu0 0.0
        %547 = vmatpush1.msra.mxu0 0.0
        %548 = vmatprep.subr.mxu0 0.0
        %549 = vmatpush1.msra.mxu0 0.0
        %550 = vmatprep.subr.mxu0 0.0
        %551 = vmatpush1.msra.mxu0 0.0
        %552 = vmatprep.subr.mxu0 0.0
        %553 = vmatpush1.msra.mxu0 0.0
        %554 = vmatprep.subr.mxu0 0.0
        %555 = vmatpush1.msra.mxu0 0.0
        %556 = vmatprep.subr.mxu0 0.0
        %557 = vmatpush1.msra.mxu0 0.0
        %558 = vmatprep.subr.mxu0 0.0
        %559 = vmatpush1.msra.mxu0 0.0
        %560 = vmatprep.subr.mxu0 0.0
        %561 = vmatpush1.msra.mxu0 0.0
        %562 = vmatprep.subr.mxu0 0.0
        %563 = vmatpush1.msra.mxu0 %v343
        %564 = vmatprep.subr.mxu0 0.0
        %565 = vmatpush1.msra.mxu0 %v294
        %566 = vmatprep.subr.mxu0 0.0
        %567 = vmatpush2.msra.mxu0 0.0
        %568 = vmatprep.subr.mxu0 0.0
        %569 = vmatpush2.msra.mxu0 0.0
        %570 = vmatprep.subr.mxu0 0.0
        %571 = vmatpush2.msra.mxu0 0.0
        %572 = vmatprep.subr.mxu0 0.0
        %573 = vmatpush2.msra.mxu0 0.0
        %574 = vmatprep.subr.mxu0 0.0
        %575 = vmatpush2.msra.mxu0 0.0
        %576 = vmatprep.subr.mxu0 0.0
        %577 = vmatpush2.msra.mxu0 0.0
        %578 = vmatprep.subr.mxu0 0.0
        %579 = vmatpush2.msra.mxu0 0.0
        %580 = vmatprep.subr.mxu0 0.0
        %581 = vmatpush2.msra.mxu0 0.0
        %582 = vmatprep.subr.mxu0 0.0
        %583 = vmatpush2.msra.mxu0 0.0
        %584 = vmatprep.subr.mxu0 0.0
        %585 = vmatpush2.msra.mxu0 0.0
        %586 = vmatprep.subr.mxu0 0.0
        %587 = vmatpush2.msra.mxu0 0.0
        %588 = vmatprep.subr.mxu0 0.0
        %589 = vmatpush2.msra.mxu0 0.0
        %590 = vmatprep.subr.mxu0 0.0
        %591 = vmatpush2.msra.mxu0 0.0
        %592 = vmatprep.subr.mxu0 0.0
        %593 = vmatpush2.msra.mxu0 0.0
        %594 = vmatprep.subr.mxu0 0.0
        %595 = vmatpush2.msra.mxu0 0.0
        %596 = vmatprep.subr.mxu0 0.0
        %597 = vmatpush2.msra.mxu0 0.0
        %598 = vmatprep.mubr.f32.mxu0 0.0
        %599 = vmatmul.mubr.f32.gmra.mxu0 %v529
        %v600 = vpop.f32.mrf.mxu0
        %v601 = vadd.f32 0.0, %v600
        %v602 = vpop.f32.mrf.mxu0
        %603 = vmatprep.mubr.f32.mxu0 0.0
        %604 = vmatmul.mubr.f32.gmra.mxu0 %v532
        %v605 = vpop.f32.mrf.mxu0
        %v606 = vadd.f32 0.0, %v605
        %v607 = vpop.f32.mrf.mxu0
        %608 = vdwg.mxu0
        %v609 = vcombine.high %v601, 0.0
        %v611 = vunpack.c.l.s4 1983009808
        %v612 = vunpack.c.0.s8 %v611
        %v613 = vlaneseq
        %v614 = vshrl.u32 %v613, 7
        %v615 = vsub.s32 %v612, %v614
        %v616 = vrot.slane %v601, %v615
        %v618 = vunpack.c.l.s4 1983009808
        %v619 = vunpack.c.0.s8 %v618
        %v620 = vlaneseq
        %v621 = vshrl.u32 %v620, 7
        %v622 = vsub.s32 %v619, %v621
        %v623 = vrot.slane %v609, %v622
        %v624 = vcombine.high %v616, 0.0
        %v626 = vunpack.c.l.s4 1934713408
        %v627 = vunpack.c.0.s8 %v626
        %v628 = vlaneseq
        %v629 = vshrl.u32 %v628, 7
        %v630 = vsub.s32 %v627, %v629
        %v631 = vrot.slane %v616, %v630
        %v633 = vunpack.c.l.s4 1934713408
        %v634 = vunpack.c.0.s8 %v633
        %v635 = vlaneseq
        %v636 = vshrl.u32 %v635, 7
        %v637 = vsub.s32 %v634, %v636
        %v638 = vrot.slane %v624, %v637
        %v639 = vcombine.high %v623, 0.0
        %v641 = vunpack.c.l.s4 1934713408
        %v642 = vunpack.c.0.s8 %v641
        %v643 = vlaneseq
        %v644 = vshrl.u32 %v643, 7
        %v645 = vsub.s32 %v642, %v644
        %v646 = vrot.slane %v623, %v645
        %v648 = vunpack.c.l.s4 1934713408
        %v649 = vunpack.c.0.s8 %v648
        %v650 = vlaneseq
        %v651 = vshrl.u32 %v650, 7
        %v652 = vsub.s32 %v649, %v651
        %v653 = vrot.slane %v639, %v652
        %v654 = vcombine.high %v631, 0.0
        %v655 = vcombine.high %v638, 0.0
        %v656 = vcombine.high %v646, 0.0
        %v657 = vcombine.high %v653, 0.0
        %v658 = vcombine.high %v606, 0.0
        %v660 = vunpack.c.l.s4 1983009808
        %v661 = vunpack.c.0.s8 %v660
        %v662 = vlaneseq
        %v663 = vshrl.u32 %v662, 7
        %v664 = vsub.s32 %v661, %v663
        %v665 = vrot.slane %v606, %v664
        %v667 = vunpack.c.l.s4 1983009808
        %v668 = vunpack.c.0.s8 %v667
        %v669 = vlaneseq
        %v670 = vshrl.u32 %v669, 7
        %v671 = vsub.s32 %v668, %v670
        %v672 = vrot.slane %v658, %v671
        %v673 = vcombine.high %v665, 0.0
        %v675 = vunpack.c.l.s4 1934713408
        %v676 = vunpack.c.0.s8 %v675
        %v677 = vlaneseq
        %v678 = vshrl.u32 %v677, 7
        %v679 = vsub.s32 %v676, %v678
        %v680 = vrot.slane %v665, %v679
        %v682 = vunpack.c.l.s4 1934713408
        %v683 = vunpack.c.0.s8 %v682
        %v684 = vlaneseq
        %v685 = vshrl.u32 %v684, 7
        %v686 = vsub.s32 %v683, %v685
        %v687 = vrot.slane %v673, %v686
        %v688 = vcombine.high %v672, 0.0
        %v690 = vunpack.c.l.s4 1934713408
        %v691 = vunpack.c.0.s8 %v690
        %v692 = vlaneseq
        %v693 = vshrl.u32 %v692, 7
        %v694 = vsub.s32 %v691, %v693
        %v695 = vrot.slane %v672, %v694
        %v697 = vunpack.c.l.s4 1934713408
        %v698 = vunpack.c.0.s8 %v697
        %v699 = vlaneseq
        %v700 = vshrl.u32 %v699, 7
        %v701 = vsub.s32 %v698, %v700
        %v702 = vrot.slane %v688, %v701
        %v703 = vcombine.high %v680, 0.0
        %v704 = vcombine.high %v687, 0.0
        %v705 = vcombine.high %v695, 0.0
        %v706 = vcombine.high %v702, 0.0
        %708 = vrot.lane.b32.xlu0 %v654, 16
        %v709 = vpop.permute.xlu0 %708
        %712 = vrot.lane.b32.xlu0 %v638, 32
        %v713 = vpop.permute.xlu0 %712
        %716 = vrot.lane.b32.xlu0 %v655, 48
        %v717 = vpop.permute.xlu0 %716
        %720 = vrot.lane.b32.xlu0 %v646, 64
        %v721 = vpop.permute.xlu0 %720
        %724 = vrot.lane.b32.xlu0 %v656, 80
        %v725 = vpop.permute.xlu0 %724
        %728 = vrot.lane.b32.xlu0 %v653, 96
        %v729 = vpop.permute.xlu0 %728
        %732 = vrot.lane.b32.xlu0 %v657, 112
        %v733 = vpop.permute.xlu0 %732
        %736 = vrot.lane.b32.xlu0 %v703, 16
        %v737 = vpop.permute.xlu0 %736
        %740 = vrot.lane.b32.xlu0 %v687, 32
        %v741 = vpop.permute.xlu0 %740
        %744 = vrot.lane.b32.xlu0 %v704, 48
        %v745 = vpop.permute.xlu0 %744
        %748 = vrot.lane.b32.xlu0 %v695, 64
        %v749 = vpop.permute.xlu0 %748
        %752 = vrot.lane.b32.xlu0 %v705, 80
        %v753 = vpop.permute.xlu0 %752
        %756 = vrot.lane.b32.xlu0 %v702, 96
        %v757 = vpop.permute.xlu0 %756
        %760 = vrot.lane.b32.xlu0 %v706, 112
        %v761 = vpop.permute.xlu0 %760
        %v763 = vsel %vm442, %v631, %v709
        %vm764 = vcmask 261120
        %v765 = vsel %vm764, %v763, %v713
        %vm766 = vcmask 392192
        %v767 = vsel %vm766, %v765, %v717
        %vm768 = vcmask 523264
        %v769 = vsel %vm768, %v767, %v721
        %vm770 = vcmask 654336
        %v771 = vsel %vm770, %v769, %v725
        %vm772 = vcmask 785408
        %v773 = vsel %vm772, %v771, %v729
        %vm774 = vcmask 916480
        %v775 = vsel %vm774, %v773, %v733
        %v776 = vsel %vm442, %v680, %v737
        %v777 = vsel %vm764, %v776, %v741
        %v778 = vsel %vm766, %v777, %v745
        %v779 = vsel %vm768, %v778, %v749
        %v780 = vsel %vm770, %v779, %v753
        %v781 = vsel %vm772, %v780, %v757
        %v782 = vsel %vm774, %v781, %v761
        %v785 = vcombine.low %v775, %v782
        %v787 = vunpack.c.l.s4 1966171168
        %v788 = vunpack.c.0.s8 %v787
        %v789 = vlaneseq
        %v790 = vshrl.u32 %v789, 7
        %v791 = vsub.s32 %v788, %v790
        %v792 = vrot.slane %v785, %v791
        %v794 = vunpack.c.l.s4 1966171168
        %v795 = vunpack.c.0.s8 %v794
        %v796 = vlaneseq
        %v797 = vshrl.u32 %v796, 7
        %v798 = vsub.s32 %v795, %v797
        %v799 = vrot.slane %v792, %v798
        %v801 = vlaneseq
        %vm802 = vcmp.ge.s32.totalorder %v801, 0
        %vm803 = vcmp.lt.s32.totalorder %v801, 256
        %vm804 = vmand %vm802, %vm803
        %805 = vst.msk [vmem:[%s197] sm:$0x3] %vm804, %v799
        %s806 = sand.u32 %s82, 1
        %s807 = scalar_lea.sflag [#allocation4], %s806
        %s808 = sand.u32 %s82, 1
        %s809 = smul.addr %s808, 2
        %s810 = scalar_lea.vmem [#allocation7], %s809
        // Predicated region
        $region37: #{tpu_custom_call.1} parent=27 // pred_check
          %p811 = pneg %p92
        $region38: #{tpu_custom_call.1} parent=27 // pred_check_branch
          %813 = sbr.rel (%p811) target = $region40
        $region39: #{tpu_custom_call.1} parent=27 // pred_region
          %s815 = ssub.s32 32, 32
          %816 = vsyncadd %s807, %s815
          %s817 = smul.addr %s22, 2
          %s818 = smul.addr %s817, 16
          %s819 = scalar_lea.hbm %s2, %s818
          %s821 = sshll.u32 %s810, 4
          %s822 = int_to_ptr.vmem [resolvable:$true] %s821
          %824 = dma.vmem_to_hbm [thread:$0]  %s822, 32, %s819, %s807
        $region40: #{tpu_custom_call.1} parent=27 // pred_fallthru
          _
      $region28: #{tpu_custom_call.1} parent=5 // pred_fallthru
        _
      %p825 = scmp.le.s32.totalorder 2, %s17
      // Predicated region
      $region41: #{tpu_custom_call.1} parent=5 // pred_check
        %p826 = pneg %p825
      $region42: #{tpu_custom_call.1} parent=5 // pred_check_branch
        %828 = sbr.rel (%p826) target = $region44
      $region43: #{tpu_custom_call.1} parent=5 // pred_region
        %s829 = ssub.s32 %s17, 2
        // Predicated region
        $region45: #{tpu_custom_call.1} parent=43 // pred_check
          %p830 = pneg %p98
        $region46: #{tpu_custom_call.1} parent=43 // pred_check_branch
          %832 = sbr.rel (%p830) target = $region48
        $region47: #{tpu_custom_call.1} parent=43 // pred_region
          %s833 = sand.u32 %s83, 1
          %s834 = scalar_lea.sflag [#allocation4], %s833
          %s835 = sand.u32 %s83, 1
          %s836 = smul.addr %s835, 2
          %s837 = scalar_lea.vmem [#allocation7], %s836
          %838 = dma.done %s834, 32
        $region48: #{tpu_custom_call.1} parent=43 // pred_fallthru
          _
      $region44: #{tpu_custom_call.1} parent=5 // pred_fallthru
        _
    $region6: #{tpu_custom_call.1} parent=1 // loop_footer
      %s21 = sadd.s32 1, %s17
    $region7: #{tpu_custom_call.1} parent=1 // loop_footer_branch
      %16 = sbr.rel target = $region3
    $region8: #{tpu_custom_call.1} parent=1 // loop_exit
      _
    %839 = vsyncpa [#allocation3], 1
    %s840 = scalar_lea.sflag [#allocation3], 1
    %841 = vsyncpa %s840, 1
    %842 = vsyncpa [#allocation6], 1
    %s843 = scalar_lea.sflag [#allocation6], 1
    %844 = vsyncpa %s843, 1
    %845 = vsyncpa [#allocation4], 1
    %s846 = scalar_lea.sflag [#allocation4], 1
    %847 = vsyncpa %s846, 1

// kernel: tpu_custom_call.1
$region0: #{tpu_custom_call.1}
  #allocation0 [shape = 'u32[]', space=smem, size = 0x4, offset = 0x4, fixed_abs, tag = 'smem constant byte address 0x4 - core index']
  #allocation1 [shape = 'u32[144,128]{1,0:T(1,128)}', space=vmem, size = 0x12000, scoped, tag = 'internal scratch']
  %s0 = inlined_call_operand.hbm [shape: f32[4,16,16], index: 0, kind: input, shape index: {}]
  %s1 = inlined_call_operand.hbm [shape: f32[4,16,16], index: 1, kind: input, shape index: {}]
  %s2 = inlined_call_operand.hbm [shape: f32[4,16,16], index: 2, kind: output, shape index: {}]
  %s3 = sld [smem:[#allocation0]]
  $region49: #{tpu_custom_call.1} parent=0
    _
  %s5 = ssub.s32 1, %s3
  %s6 = scalar_select 0, %s5, %s3
  $region1: #{tpu_custom_call.1} parent=0
    #allocation2 [shape = 'u8[16384]{0}', space=vmem, size = 0x4000, scoped, tag = 'input window, operand 0']
    #allocation3 [shape = 's32[2]{0}', space=sflag, size = 0x8, scoped, tag = 'scoped memory for tpu_custom_call.1']
    #allocation4 [shape = 's32[2]{0}', space=sflag, size = 0x8, scoped, tag = 'scoped memory for tpu_custom_call.1']
    #allocation5 [shape = 'u8[16384]{0}', space=vmem, size = 0x4000, scoped, tag = 'input window, operand 1']
    #allocation6 [shape = 's32[2]{0}', space=sflag, size = 0x8, scoped, tag = 'scoped memory for tpu_custom_call.1']
    #allocation7 [shape = 'u8[16384]{0}', space=vmem, size = 0x4000, scoped, tag = 'output window, operand 0']
    %7 = vsyncpa [#allocation3], 0
    %s8 = scalar_lea.sflag [#allocation3], 1
    %9 = vsyncpa %s8, 0
    %10 = vsyncpa [#allocation6], 0
    %s11 = scalar_lea.sflag [#allocation6], 1
    %12 = vsyncpa %s11, 0
    %13 = vsyncpa [#allocation4], 0
    %s14 = scalar_lea.sflag [#allocation4], 1
    %15 = vsyncpa %s14, 0
    loop: start=0, step=1, limit=6
    $region2: #{tpu_custom_call.1} parent=1 // loop_pre_header
      _
    $region3: #{tpu_custom_call.1} parent=1 // loop_header
      %s17 = sphi 0, %s21
      %p18 = scmp.ge.s32.totalorder %s17, 6
      %s27 = sphi 0, %s29
      %s30 = sphi 0, %s27
      %s31 = sphi 0, %s30
      %s47 = sphi 0, %s31
      %s53 = sphi 0, %s55
      %s56 = sphi 0, %s53
      %s57 = sphi 0, %s56
      %s73 = sphi 0, %s57
      %s79 = sphi 0, %s81
      %s82 = sphi 0, %s79
      %s83 = sphi 0, %s82
      %s99 = sphi 0, %s83
    $region4: #{tpu_custom_call.1} parent=1 // loop_header_branch
      %20 = sbr.rel (%p18) target = $region8
    $region5: #{tpu_custom_call.1} parent=1 // loop_body
      %s22 = ssub.s32 %s17, 1
      %s23 = ssub.s32 %s17, 2
      %s24 = sadd.s32 %s17, 1
      %s25 = ssub.s32 %s17, %s24
      %p26 = scmp.eq.s32.totalorder %s25, 0
      %s28 = sadd.s32 %s27, 1
      %s29 = scalar_select %p26, %s27, %s28
      %p32 = pneg %p26
      %p33 = scmp.eq.s32.totalorder %s17, 3
      %p34 = por %p32, %p33
      %p35 = scmp.ne.s32.totalorder %s27, %s30
      %p36 = scmp.eq.s32.totalorder %s17, 0
      %p37 = por %p35, %p36
      %p38 = scmp.ne.s32.totalorder %s27, %s30
      %p39 = scmp.eq.s32.totalorder %s22, 3
      %p40 = por %p38, %p39
      %p41 = scmp.ne.s32.totalorder %s30, %s31
      %p42 = scmp.eq.s32.totalorder %s22, 0
      %p43 = por %p41, %p42
      %p44 = scmp.ne.s32.totalorder %s30, %s31
      %p45 = scmp.eq.s32.totalorder %s23, 3
      %p46 = por %p44, %p45
      %p48 = scmp.ne.s32.totalorder %s31, %s47
      %p49 = scmp.eq.s32.totalorder %s23, 0
      %p50 = por %p48, %p49
      %s51 = ssub.s32 %s17, %s24
      %p52 = scmp.eq.s32.totalorder %s51, 0
      %s54 = sadd.s32 %s53, 1
      %s55 = scalar_select %p52, %s53, %s54
      %p58 = pneg %p52
      %p59 = scmp.eq.s32.totalorder %s17, 3
      %p60 = por %p58, %p59
      %p61 = scmp.ne.s32.totalorder %s53, %s56
      %p62 = scmp.eq.s32.totalorder %s17, 0
      %p63 = por %p61, %p62
      %p64 = scmp.ne.s32.totalorder %s53, %s56
      %p65 = scmp.eq.s32.totalorder %s22, 3
      %p66 = por %p64, %p65
      %p67 = scmp.ne.s32.totalorder %s56, %s57
      %p68 = scmp.eq.s32.totalorder %s22, 0
      %p69 = por %p67, %p68
      %p70 = scmp.ne.s32.totalorder %s56, %s57
      %p71 = scmp.eq.s32.totalorder %s23, 3
      %p72 = por %p70, %p71
      %p74 = scmp.ne.s32.totalorder %s57, %s73
      %p75 = scmp.eq.s32.totalorder %s23, 0
      %p76 = por %p74, %p75
      %s77 = ssub.s32 %s17, %s24
      %p78 = scmp.eq.s32.totalorder %s77, 0
      %s80 = sadd.s32 %s79, 1
      %s81 = scalar_select %p78, %s79, %s80
      %p84 = pneg %p78
      %p85 = scmp.eq.s32.totalorder %s17, 3
      %p86 = por %p84, %p85
      %p87 = scmp.ne.s32.totalorder %s79, %s82
      %p88 = scmp.eq.s32.totalorder %s17, 0
      %p89 = por %p87, %p88
      %p90 = scmp.ne.s32.totalorder %s79, %s82
      %p91 = scmp.eq.s32.totalorder %s22, 3
      %p92 = por %p90, %p91
      %p93 = scmp.ne.s32.totalorder %s82, %s83
      %p94 = scmp.eq.s32.totalorder %s22, 0
      %p95 = por %p93, %p94
      %p96 = scmp.ne.s32.totalorder %s82, %s83
      %p97 = scmp.eq.s32.totalorder %s23, 3
      %p98 = por %p96, %p97
      %p100 = scmp.ne.s32.totalorder %s83, %s99
      %p101 = scmp.eq.s32.totalorder %s23, 0
      %p102 = por %p100, %p101
      %p103 = scmp.le.s32.totalorder 1, %s17
      %p104 = scmp.lt.s32.totalorder %s17, 5
      %p105 = pnand %p103, %p104
      %p106 = pneg %p105
      // Predicated region
      $region9: #{tpu_custom_call.1} parent=5 // pred_check
        _
      $region10: #{tpu_custom_call.1} parent=5 // pred_check_branch
        %108 = sbr.rel (%p105) target = $region12
      $region11: #{tpu_custom_call.1} parent=5 // pred_region
        %s109 = ssub.s32 %s17, 1
      $region12: #{tpu_custom_call.1} parent=5 // pred_fallthru
        _
      %p110 = scmp.lt.s32.totalorder %s17, 4
      // Predicated region
      $region13: #{tpu_custom_call.1} parent=5 // pred_check
        %p111 = pneg %p110
      $region14: #{tpu_custom_call.1} parent=5 // pred_check_branch
        %113 = sbr.rel (%p111) target = $region16
      $region15: #{tpu_custom_call.1} parent=5 // pred_region
        // Predicated region
        $region17: #{tpu_custom_call.1} parent=15 // pred_check
          %p114 = pneg %p37
        $region18: #{tpu_custom_call.1} parent=15 // pred_check_branch
          %116 = sbr.rel (%p114) target = $region20
        $region19: #{tpu_custom_call.1} parent=15 // pred_region
          %s117 = sand.u32 %s27, 1
          %s118 = scalar_lea.sflag [#allocation3], %s117
          %s119 = sand.u32 %s27, 1
          %s120 = smul.addr %s119, 16
          %s121 = scalar_lea.vmem [#allocation2], %s120
          %s123 = ssub.s32 256, 256
          %124 = vsyncadd %s118, %s123
          %s125 = smul.addr %s17, 2
          %s126 = smul.addr %s125, 128
          %s127 = scalar_lea.hbm %s0, %s126
          %s128 = sshll.u32 %s121, 4
          %s129 = int_to_ptr.vmem [resolvable:$true] %s128
          %134 = dma.hbm_to_vmem [thread:$0]  %s127, 256, %s129, %s118, 128, 128, 8
        $region20: #{tpu_custom_call.1} parent=15 // pred_fallthru
          _
        // Predicated region
        $region21: #{tpu_custom_call.1} parent=15 // pred_check
          %p135 = pneg %p63
        $region22: #{tpu_custom_call.1} parent=15 // pred_check_branch
          %137 = sbr.rel (%p135) target = $region24
        $region23: #{tpu_custom_call.1} parent=15 // pred_region
          %s138 = sand.u32 %s53, 1
          %s139 = scalar_lea.sflag [#allocation6], %s138
          %s140 = sand.u32 %s53, 1
          %s141 = smul.addr %s140, 16
          %s142 = scalar_lea.vmem [#allocation5], %s141
          %s144 = ssub.s32 256, 256
          %145 = vsyncadd %s139, %s144
          %s146 = smul.addr %s17, 2
          %s147 = smul.addr %s146, 128
          %s148 = scalar_lea.hbm %s1, %s147
          %s149 = sshll.u32 %s142, 4
          %s150 = int_to_ptr.vmem [resolvable:$true] %s149
          %155 = dma.hbm_to_vmem [thread:$0]  %s148, 256, %s150, %s139, 128, 128, 8
        $region24: #{tpu_custom_call.1} parent=15 // pred_fallthru
          _
      $region16: #{tpu_custom_call.1} parent=5 // pred_fallthru
        _
      %p156 = scmp.le.s32.totalorder 1, %s17
      %p157 = scmp.lt.s32.totalorder %s17, 5
      %p158 = pnand %p156, %p157
      %p159 = pneg %p158
      // Predicated region
      $region25: #{tpu_custom_call.1} parent=5 // pred_check
        _
      $region26: #{tpu_custom_call.1} parent=5 // pred_check_branch
        %161 = sbr.rel (%p158) target = $region28
      $region27: #{tpu_custom_call.1} parent=5 // pred_region
        %s162 = ssub.s32 %s17, 1
        %s163 = sand.u32 %s30, 1
        %s164 = scalar_lea.sflag [#allocation3], %s163
        %s165 = sand.u32 %s30, 1
        %s166 = smul.addr %s165, 16
        %s167 = scalar_lea.vmem [#allocation2], %s166
        // Predicated region
        $region29: #{tpu_custom_call.1} parent=27 // pred_check
          %p168 = pneg %p43
        $region30: #{tpu_custom_call.1} parent=27 // pred_check_branch
          %170 = sbr.rel (%p168) target = $region32
        $region31: #{tpu_custom_call.1} parent=27 // pred_region
          %171 = dma.done %s164, 256
        $region32: #{tpu_custom_call.1} parent=27 // pred_fallthru
          _
        %s172 = sand.u32 %s56, 1
        %s173 = scalar_lea.sflag [#allocation6], %s172
        %s174 = sand.u32 %s56, 1
        %s175 = smul.addr %s174, 16
        %s176 = scalar_lea.vmem [#allocation5], %s175
        // Predicated region
        $region33: #{tpu_custom_call.1} parent=27 // pred_check
          %p177 = pneg %p69
        $region34: #{tpu_custom_call.1} parent=27 // pred_check_branch
          %179 = sbr.rel (%p177) target = $region36
        $region35: #{tpu_custom_call.1} parent=27 // pred_region
          %180 = dma.done %s173, 256
        $region36: #{tpu_custom_call.1} parent=27 // pred_fallthru
          _
        %s181 = sand.u32 %s30, 1
        %s182 = scalar_lea.sflag [#allocation3], %s181
        %s183 = sand.u32 %s30, 1
        %s184 = smul.addr %s183, 16
        %s185 = scalar_lea.vmem [#allocation2], %s184
        %p186 = pneg %p43
        %p187 = pneg %p40
        %s188 = sand.u32 %s56, 1
        %s189 = scalar_lea.sflag [#allocation6], %s188
        %s190 = sand.u32 %s56, 1
        %s191 = smul.addr %s190, 16
        %s192 = scalar_lea.vmem [#allocation5], %s191
        %p193 = pneg %p69
        %p194 = pneg %p66
        %p195 = pneg %p95
        %p196 = pneg %p92
        %s197 = sand.u32 %s82, 1
        %s198 = scalar_lea.sflag [#allocation4], %s197
        %s199 = sand.u32 %s82, 1
        %s200 = smul.addr %s199, 16
        %s201 = scalar_lea.vmem [#allocation7], %s200
        %v202 = vld [vmem:[%s167] sm:$0xff]
        %v203 = vld [vmem:[%s167 + $0x8] sm:$0xff]
        %v204 = vld [vmem:[%s176] sm:$0xff]
        %v205 = vld [vmem:[%s176 + $0x8] sm:$0xff]
        %vm206 = vcmask 130048
        %v208 = vsel %vm206, %v202, 0
        %v211 = vsel %vm206, %v203, 0
        %v214 = vsel %vm206, %v204, 0
        %v217 = vsel %vm206, %v205, 0
        %219 = vmatprep.subr.mxu0 0.0
        %220 = vmatpush1.xpose.msra.mxu0 0.0
        %221 = vmatprep.subr.mxu0 0.0
        %222 = vmatpush1.xpose.msra.mxu0 0.0
        %223 = vmatprep.subr.mxu0 0.0
        %224 = vmatpush1.xpose.msra.mxu0 0.0
        %225 = vmatprep.subr.mxu0 0.0
        %226 = vmatpush1.xpose.msra.mxu0 0.0
        %227 = vmatprep.subr.mxu0 0.0
        %228 = vmatpush1.xpose.msra.mxu0 0.0
        %229 = vmatprep.subr.mxu0 0.0
        %230 = vmatpush1.xpose.msra.mxu0 0.0
        %231 = vmatprep.subr.mxu0 0.0
        %232 = vmatpush1.xpose.msra.mxu0 0.0
        %233 = vmatprep.subr.mxu0 0.0
        %234 = vmatpush1.xpose.msra.mxu0 0.0
        %235 = vmatprep.subr.mxu0 0.0
        %236 = vmatpush1.xpose.msra.mxu0 0.0
        %237 = vmatprep.subr.mxu0 0.0
        %238 = vmatpush1.xpose.msra.mxu0 0.0
        %239 = vmatprep.subr.mxu0 0.0
        %240 = vmatpush1.xpose.msra.mxu0 0.0
        %241 = vmatprep.subr.mxu0 0.0
        %242 = vmatpush1.xpose.msra.mxu0 0.0
        %243 = vmatprep.subr.mxu0 0.0
        %244 = vmatpush1.xpose.msra.mxu0 0.0
        %245 = vmatprep.subr.mxu0 0.0
        %246 = vmatpush1.xpose.msra.mxu0 0.0
        %247 = vmatprep.subr.mxu0 0.0
        %248 = vmatpush1.xpose.msra.mxu0 %v217
        %249 = vmatprep.subr.mxu0 0.0
        %250 = vmatpush1.xpose.msra.mxu0 %v214
        %251 = vmatprep.subr.mxu0 0.0
        %252 = vmatpush2.xpose.msra.mxu0 0.0
        %253 = vmatprep.subr.mxu0 0.0
        %254 = vmatpush2.xpose.msra.mxu0 0.0
        %255 = vmatprep.subr.mxu0 0.0
        %256 = vmatpush2.xpose.msra.mxu0 0.0
        %257 = vmatprep.subr.mxu0 0.0
        %258 = vmatpush2.xpose.msra.mxu0 0.0
        %259 = vmatprep.subr.mxu0 0.0
        %260 = vmatpush2.xpose.msra.mxu0 0.0
        %261 = vmatprep.subr.mxu0 0.0
        %262 = vmatpush2.xpose.msra.mxu0 0.0
        %263 = vmatprep.subr.mxu0 0.0
        %264 = vmatpush2.xpose.msra.mxu0 0.0
        %265 = vmatprep.subr.mxu0 0.0
        %266 = vmatpush2.xpose.msra.mxu0 0.0
        %267 = vmatprep.subr.mxu0 0.0
        %268 = vmatpush2.xpose.msra.mxu0 0.0
        %269 = vmatprep.subr.mxu0 0.0
        %270 = vmatpush2.xpose.msra.mxu0 0.0
        %271 = vmatprep.subr.mxu0 0.0
        %272 = vmatpush2.xpose.msra.mxu0 0.0
        %273 = vmatprep.subr.mxu0 0.0
        %274 = vmatpush2.xpose.msra.mxu0 0.0
        %275 = vmatprep.subr.mxu0 0.0
        %276 = vmatpush2.xpose.msra.mxu0 0.0
        %277 = vmatprep.subr.mxu0 0.0
        %278 = vmatpush2.xpose.msra.mxu0 0.0
        %279 = vmatprep.subr.mxu0 0.0
        %280 = vmatpush2.xpose.msra.mxu0 0.0
        %281 = vmatprep.subr.mxu0 0.0
        %282 = vmatpush2.xpose.msra.mxu0 0.0
        %283 = vmatprep.mubr.f32.mxu0 0.0
        %284 = vmatmul.mubr.f32.gmra.mxu0 %v208
        %v285 = vpop.f32.mrf.mxu0
        %v286 = vadd.f32 0.0, %v285
        %v287 = vpop.f32.mrf.mxu0
        %288 = vmatprep.mubr.f32.mxu0 0.0
        %289 = vmatmul.mubr.f32.gmra.mxu0 %v211
        %v290 = vpop.f32.mrf.mxu0
        %v291 = vadd.f32 0.0, %v290
        %v292 = vpop.f32.mrf.mxu0
        %293 = vdwg.mxu0
        %v295 = vsel %vm206, %v286, 0
        %v298 = vsel %vm206, %v291, 0
        %300 = vmatprep.subr.mxu0 0.0
        %301 = vmatpush1.msra.mxu0 0.0
        %302 = vmatprep.subr.mxu0 0.0
        %303 = vmatpush1.msra.mxu0 0.0
        %304 = vmatprep.subr.mxu0 0.0
        %305 = vmatpush1.msra.mxu0 0.0
        %306 = vmatprep.subr.mxu0 0.0
        %307 = vmatpush1.msra.mxu0 0.0
        %308 = vmatprep.subr.mxu0 0.0
        %309 = vmatpush1.msra.mxu0 0.0
        %310 = vmatprep.subr.mxu0 0.0
        %311 = vmatpush1.msra.mxu0 0.0
        %312 = vmatprep.subr.mxu0 0.0
        %313 = vmatpush1.msra.mxu0 0.0
        %314 = vmatprep.subr.mxu0 0.0
        %315 = vmatpush1.msra.mxu0 0.0
        %316 = vmatprep.subr.mxu0 0.0
        %317 = vmatpush1.msra.mxu0 0.0
        %318 = vmatprep.subr.mxu0 0.0
        %319 = vmatpush1.msra.mxu0 0.0
        %320 = vmatprep.subr.mxu0 0.0
        %321 = vmatpush1.msra.mxu0 0.0
        %322 = vmatprep.subr.mxu0 0.0
        %323 = vmatpush1.msra.mxu0 0.0
        %324 = vmatprep.subr.mxu0 0.0
        %325 = vmatpush1.msra.mxu0 0.0
        %326 = vmatprep.subr.mxu0 0.0
        %327 = vmatpush1.msra.mxu0 0.0
        %328 = vmatprep.subr.mxu0 0.0
        %329 = vmatpush1.msra.mxu0 %v203
        %330 = vmatprep.subr.mxu0 0.0
        %331 = vmatpush1.msra.mxu0 %v202
        %332 = vmatprep.subr.mxu0 0.0
        %333 = vmatpush2.msra.mxu0 0.0
        %334 = vmatprep.subr.mxu0 0.0
        %335 = vmatpush2.msra.mxu0 0.0
        %336 = vmatprep.subr.mxu0 0.0
        %337 = vmatpush2.msra.mxu0 0.0
        %338 = vmatprep.subr.mxu0 0.0
        %339 = vmatpush2.msra.mxu0 0.0
        %340 = vmatprep.subr.mxu0 0.0
        %341 = vmatpush2.msra.mxu0 0.0
        %342 = vmatprep.subr.mxu0 0.0
        %343 = vmatpush2.msra.mxu0 0.0
        %344 = vmatprep.subr.mxu0 0.0
        %345 = vmatpush2.msra.mxu0 0.0
        %346 = vmatprep.subr.mxu0 0.0
        %347 = vmatpush2.msra.mxu0 0.0
        %348 = vmatprep.subr.mxu0 0.0
        %349 = vmatpush2.msra.mxu0 0.0
        %350 = vmatprep.subr.mxu0 0.0
        %351 = vmatpush2.msra.mxu0 0.0
        %352 = vmatprep.subr.mxu0 0.0
        %353 = vmatpush2.msra.mxu0 0.0
        %354 = vmatprep.subr.mxu0 0.0
        %355 = vmatpush2.msra.mxu0 0.0
        %356 = vmatprep.subr.mxu0 0.0
        %357 = vmatpush2.msra.mxu0 0.0
        %358 = vmatprep.subr.mxu0 0.0
        %359 = vmatpush2.msra.mxu0 0.0
        %360 = vmatprep.subr.mxu0 0.0
        %361 = vmatpush2.msra.mxu0 0.0
        %362 = vmatprep.subr.mxu0 0.0
        %363 = vmatpush2.msra.mxu0 0.0
        %364 = vmatprep.mubr.f32.mxu0 0.0
        %365 = vmatmul.mubr.f32.gmra.mxu0 %v295
        %v366 = vpop.f32.mrf.mxu0
        %v367 = vadd.f32 0.0, %v366
        %v368 = vpop.f32.mrf.mxu0
        %369 = vmatprep.mubr.f32.mxu0 0.0
        %370 = vmatmul.mubr.f32.gmra.mxu0 %v298
        %v371 = vpop.f32.mrf.mxu0
        %v372 = vadd.f32 0.0, %v371
        %v373 = vpop.f32.mrf.mxu0
        %374 = vdwg.mxu0
        %375 = vst.msk [vmem:[%s201] sm:$0xff] %vm206, %v367
        %376 = vst.msk [vmem:[%s201 + $0x8] sm:$0xff] %vm206, %v372
        %s377 = sand.u32 %s82, 1
        %s378 = scalar_lea.sflag [#allocation4], %s377
        %s379 = sand.u32 %s82, 1
        %s380 = smul.addr %s379, 16
        %s381 = scalar_lea.vmem [#allocation7], %s380
        // Predicated region
        $region37: #{tpu_custom_call.1} parent=27 // pred_check
          %p382 = pneg %p92
        $region38: #{tpu_custom_call.1} parent=27 // pred_check_branch
          %384 = sbr.rel (%p382) target = $region40
        $region39: #{tpu_custom_call.1} parent=27 // pred_region
          %s386 = ssub.s32 256, 256
          %387 = vsyncadd %s378, %s386
          %s388 = smul.addr %s22, 2
          %s389 = smul.addr %s388, 128
          %s390 = scalar_lea.hbm %s2, %s389
          %s391 = sshll.u32 %s381, 4
          %s392 = int_to_ptr.vmem [resolvable:$true] %s391
          %397 = dma.vmem_to_hbm [thread:$0]  %s392, 256, %s390, %s378, 128, 128, 8
        $region40: #{tpu_custom_call.1} parent=27 // pred_fallthru
          _
      $region28: #{tpu_custom_call.1} parent=5 // pred_fallthru
        _
      %p398 = scmp.le.s32.totalorder 2, %s17
      // Predicated region
      $region41: #{tpu_custom_call.1} parent=5 // pred_check
        %p399 = pneg %p398
      $region42: #{tpu_custom_call.1} parent=5 // pred_check_branch
        %401 = sbr.rel (%p399) target = $region44
      $region43: #{tpu_custom_call.1} parent=5 // pred_region
        %s402 = ssub.s32 %s17, 2
        // Predicated region
        $region45: #{tpu_custom_call.1} parent=43 // pred_check
          %p403 = pneg %p98
        $region46: #{tpu_custom_call.1} parent=43 // pred_check_branch
          %405 = sbr.rel (%p403) target = $region48
        $region47: #{tpu_custom_call.1} parent=43 // pred_region
          %s406 = sand.u32 %s83, 1
          %s407 = scalar_lea.sflag [#allocation4], %s406
          %s408 = sand.u32 %s83, 1
          %s409 = smul.addr %s408, 16
          %s410 = scalar_lea.vmem [#allocation7], %s409
          %411 = dma.done %s407, 256
        $region48: #{tpu_custom_call.1} parent=43 // pred_fallthru
          _
      $region44: #{tpu_custom_call.1} parent=5 // pred_fallthru
        _
    $region6: #{tpu_custom_call.1} parent=1 // loop_footer
      %s21 = sadd.s32 1, %s17
    $region7: #{tpu_custom_call.1} parent=1 // loop_footer_branch
      %16 = sbr.rel target = $region3
    $region8: #{tpu_custom_call.1} parent=1 // loop_exit
      _
    %412 = vsyncpa [#allocation3], 1
    %s413 = scalar_lea.sflag [#allocation3], 1
    %414 = vsyncpa %s413, 1
    %415 = vsyncpa [#allocation6], 1
    %s416 = scalar_lea.sflag [#allocation6], 1
    %417 = vsyncpa %s416, 1
    %418 = vsyncpa [#allocation4], 1
    %s419 = scalar_lea.sflag [#allocation4], 1
    %420 = vsyncpa %s419, 1

</llo_original>
